<compile_context>
chip_gen: v6e
topology: v6e:2x2x1
jax: 0.10.0
libtpu: 0.0.40
codegen_flags: <defaults>
</compile_context>

<pallas_src>
import jax
import jax.numpy as jnp
from jax import lax
from jax.experimental import pallas as pl
from jax.experimental.pallas import tpu as pltpu


def _round_up(v, m):
    return -(-v // m) * m


def _vmem_capacity_bytes():
    try:
        return int(pltpu.get_tpu_info().vmem_capacity_bytes)
    except Exception:
        return 64 * 1024 * 1024  # v7x floor; conservative fallback


def _mean_pool_kernel(x_ref, mask_ref, cnt_ref, o_ref, acc_ref):
    # x_ref:    (tb, ts, th)  input tile (native dtype)
    # mask_ref: (tb, 1,  ts)  mask tile, x.dtype, lane-dense along S
    # cnt_ref:  (tb, 1,  1)   f32 precomputed mask counts (sum over S)
    # o_ref:    (tb, 1,  th)  output tile (same block across the S grid axis)
    # acc_ref:  (tb, 1,  th)  f32 scratch accumulator (persists across grid steps)
    s = pl.program_id(2)

    @pl.when(s == 0)
    def _init():
        acc_ref[...] = jnp.zeros_like(acc_ref)

    # Masked partial sum as a batched MXU contraction over the sequence tile:
    #   'bqs,bsh->bqh'  :  (tb, 1, ts) x (tb, ts, th) -> (tb, 1, th), f32 accumulation.
    acc_ref[...] += lax.dot_general(
        mask_ref[...], x_ref[...],
        dimension_numbers=(((2,), (1,)), ((0,), (0,))),
        preferred_element_type=jnp.float32)

    @pl.when(s == pl.num_programs(2) - 1)
    def _finalize():
        denom = jnp.maximum(cnt_ref[...], 1e-9)  # torch.clamp(min=1e-9)
        o_ref[...] = (acc_ref[...] / denom).astype(o_ref.dtype)


def mean_pooling(x, attention_mask, *, tb=None, ts=None, th=None,
                 x_block_budget_bytes=None, vmem_limit_bytes=None):
    """Pallas TPU masked mean-pool over the sequence axis.

    x:              (B, S, H) float array
    attention_mask: (B, S) array (any numeric / bool dtype)
    returns:        (B, H) array with x's dtype

    If overriding `ts`, use a multiple of 128 (or >= S): the lane-dense mask block
    requires a 128-aligned lane dimension unless it spans the full padded sequence.
    """
    B, S, H = x.shape
    assert attention_mask.shape == (B, S)
    itemsize = jnp.dtype(x.dtype).itemsize

    vmem_cap = _vmem_capacity_bytes()
    if x_block_budget_bytes is None:
        # ~4-8 MiB x blocks reach >85% of HBM roofline; keep double-buffered blocks
        # well inside scoped VMEM (64 MiB physical per TC on v7x, 128 MiB on v5e/v6e).
        x_block_budget_bytes = max(2 << 20, min(8 << 20, vmem_cap // 10))

    H128 = _round_up(H, 128)  # lane-dense output (avoid masked partial stores)

    # --- tile selection --------------------------------------------------------
    if tb is None:
        tb = min(B, 8)
    if th is None:
        th = H128
        # v7x megacore: if batch yields a single parallel block, split H in two
        # (only when it splits cleanly, so no extra padding traffic on v5e/v6e).
        if B <= tb and H128 >= 256 and (H128 // 2) % 128 == 0:
            th = H128 // 2
    # If tb*th is huge, shrink tb so even a ts=128 block stays near the budget.
    min_ts = min(128, _round_up(S, 8))
    while tb > 1 and tb * min_ts * th * itemsize > 2 * x_block_budget_bytes:
        tb //= 2
    if ts is None:
        rows = max(8, x_block_budget_bytes // (tb * th * itemsize))
        if rows >= _round_up(S, 8):
            ts = _round_up(S, 8)                   # single S step
        else:
            ts = max(128, (rows // 128) * 128)     # mask lane dim must be 128-aligned

    B_pad = _round_up(B, tb)
    S_pad = _round_up(S, ts)
    H_pad = _round_up(H128, th)
    grid = (B_pad // tb, H_pad // th, S_pad // ts)

    # --- wrapper-side prep (zero padding is a semantic no-op for sum/count) -----
    counts = attention_mask.astype(jnp.float32).sum(axis=1).reshape(B, 1, 1)
    mask = attention_mask.astype(x.dtype).reshape(B, 1, S)   # lane-dense along S
    if (B_pad, S_pad, H_pad) != (B, S, H):
        x = jnp.pad(x, ((0, B_pad - B), (0, S_pad - S), (0, H_pad - H)))
        mask = jnp.pad(mask, ((0, B_pad - B), (0, 0), (0, S_pad - S)))
        counts = jnp.pad(counts, ((0, B_pad - B), (0, 0), (0, 0)))

    # --- scoped VMEM budget: actual block bytes + headroom, capped at 3/4 of HW --
    if vmem_limit_bytes is None:
        x_blk = tb * ts * th * itemsize
        mask_blk = tb * 8 * ts * itemsize      # sublane dim 1 pads to 8
        out_blk = tb * 8 * th * itemsize
        acc_blk = tb * 8 * th * 4
        est = 2 * x_blk + 2 * mask_blk + 2 * out_blk + acc_blk + (2 << 20)
        vmem_limit_bytes = min(max(est, 16 << 20), vmem_cap * 3 // 4)

    out = pl.pallas_call(
        _mean_pool_kernel,
        out_shape=jax.ShapeDtypeStruct((B_pad, 1, H_pad), x.dtype),
        grid_spec=pltpu.PrefetchScalarGridSpec(
            num_scalar_prefetch=0,
            grid=grid,
            in_specs=[
                pl.BlockSpec((tb, ts, th), lambda b, h, s: (b, s, h)),
                pl.BlockSpec((tb, 1, ts), lambda b, h, s: (b, 0, s)),
                pl.BlockSpec((tb, 1, 1), lambda b, h, s: (b, 0, 0)),
            ],
            # Same output block across the S axis -> stays resident while the f32
            # scratch accumulates; written only at the last S step.
            out_specs=pl.BlockSpec((tb, 1, th), lambda b, h, s: (b, 0, h)),
            scratch_shapes=[pltpu.VMEM((tb, 1, th), jnp.float32)],
        ),
        compiler_params=pltpu.CompilerParams(
            dimension_semantics=("parallel", "parallel", "arbitrary"),
            vmem_limit_bytes=int(vmem_limit_bytes),
        ),
    )(x, mask, counts)

    return out.reshape(B_pad, H_pad)[:B, :H]


def mean_pooling_ref(x, attention_mask):
    """Plain-JAX reference replicating the PyTorch forward exactly (f32 math)."""
    m = attention_mask[:, :, None].astype(jnp.float32)
    sum_embeddings = jnp.sum(x.astype(jnp.float32) * m, axis=1)
    sum_mask = jnp.maximum(jnp.sum(m, axis=1), 1e-9)  # torch.clamp(min=1e-9)
    return (sum_embeddings / sum_mask).astype(x.dtype)


if __name__ == "__main__":
    root = jax.random.PRNGKey(0)

    def run_case(key, B, S, H, lengths, **tiles):
        x = jax.random.normal(key, (B, S, H), dtype=jnp.float32)
        # Keep values exactly bf16-representable so the check stays tight regardless of
        # how many bf16 passes the MXU uses for the f32 contraction (accumulation is
        # f32 either way; only summation order differs, ~1e-7 level).
        x = x.astype(jnp.bfloat16).astype(jnp.float32)
        lengths = jnp.asarray(lengths, dtype=jnp.int32)
        attention_mask = (jnp.arange(S)[None, :] < lengths[:, None]).astype(jnp.int32)

        out = jax.block_until_ready(mean_pooling(x, attention_mask, **tiles))
        ref = mean_pooling_ref(x, attention_mask)
        assert out.shape == (B, H), (out.shape, (B, H))
        assert out.dtype == x.dtype
        err = jnp.max(jnp.abs(out - ref))
        assert jnp.allclose(out, ref, atol=1e-5, rtol=1e-5), f"mismatch, max abs err {err}"

    k1, k2, k3 = jax.random.split(root, 3)
    # Multi-step S reduction path (grid = (1, 1, 2)).
    run_case(k1, 2, 256, 128, [37, 201], ts=128)
    # Padding on every axis + multi-block B/H/S (grid = (2, 2, 2)).
    run_case(k2, 3, 200, 192, [5, 128, 200], tb=2, ts=128, th=128)
    # Default tile selection (single S block).
    run_case(k3, 2, 256, 128, [37, 201])

    print("KERNEL_OK")
</pallas_src>

<mosaic_0001>
module attributes {stable_mosaic.version = 11 : i64} {
  func.func @_mean_pool_kernel(%arg0: i32, %arg1: i32, %arg2: i32, %arg3: memref<2x128x128xf32, #tpu.memory_space<vmem>>, %arg4: memref<2x1x128xf32, #tpu.memory_space<vmem>>, %arg5: memref<2x1x1xf32, #tpu.memory_space<vmem>>, %arg6: memref<2x1x128xf32, #tpu.memory_space<vmem>>, %arg7: memref<2x1x128xf32, #tpu.memory_space<vmem>>) attributes {dimension_semantics = [#tpu.dimension_semantics<parallel>, #tpu.dimension_semantics<parallel>, #tpu.dimension_semantics<arbitrary>], iteration_bounds = array<i64: 1, 1, 2>, scalar_prefetch = 0 : i64, scratch_operands = 1 : i64, tpu.core_type = #tpu.core_type<tc>, window_params = [{transform_indices = @transform_0, window_bounds = array<i64: 2, 128, 128>}, {transform_indices = @transform_1, window_bounds = array<i64: 2, 1, 128>}, {transform_indices = @transform_2, window_bounds = array<i64: 2, 1, 1>}, {transform_indices = @transform_3, window_bounds = array<i64: 2, 1, 128>}]} {
    %c0_i32 = arith.constant 0 : i32
    %0 = arith.cmpi eq, %arg2, %c0_i32 : i32
    %1 = arith.extui %0 : i1 to i32
    %c0_i32_0 = arith.constant 0 : i32
    %2 = arith.cmpi ne, %1, %c0_i32_0 : i32
    scf.if %2 {
      %cst_13 = arith.constant 0.000000e+00 : f32
      %12 = vector.broadcast %cst_13 : f32 to vector<2x1x128xf32>
      %c0_14 = arith.constant 0 : index
      %c0_15 = arith.constant 0 : index
      %c0_16 = arith.constant 0 : index
      %13 = vector.load %arg7[%c0_14, %c0_15, %c0_16] : memref<2x1x128xf32, #tpu.memory_space<vmem>>, vector<2x1x128xf32>
      tpu.vector_store %arg7[%c0_14, %c0_15, %c0_16], %12 {strides = array<i32>} : memref<2x1x128xf32, #tpu.memory_space<vmem>>, vector<2x1x128xf32>,
    } else {
    }
    %c0 = arith.constant 0 : index
    %c0_1 = arith.constant 0 : index
    %c0_2 = arith.constant 0 : index
    %3 = vector.load %arg7[%c0, %c0_1, %c0_2] : memref<2x1x128xf32, #tpu.memory_space<vmem>>, vector<2x1x128xf32>
    %c0_3 = arith.constant 0 : index
    %c0_4 = arith.constant 0 : index
    %c0_5 = arith.constant 0 : index
    %4 = vector.load %arg4[%c0_3, %c0_4, %c0_5] : memref<2x1x128xf32, #tpu.memory_space<vmem>>, vector<2x1x128xf32>
    %c0_6 = arith.constant 0 : index
    %c0_7 = arith.constant 0 : index
    %c0_8 = arith.constant 0 : index
    %5 = vector.load %arg3[%c0_6, %c0_7, %c0_8] : memref<2x128x128xf32, #tpu.memory_space<vmem>>, vector<2x128x128xf32>
    %cst = arith.constant dense<0.000000e+00> : vector<2x1x128xf32>
    %6 = tpu.matmul %4, %5, %cst {dimension_numbers = #tpu.dot_dimension_numbers<[2], [1], [1], [2], [0, 0, 0, 1, 1, 2], [0], [0]>} : vector<2x1x128xf32>, vector<2x128x128xf32>, vector<2x1x128xf32> -> vector<2x1x128xf32>
    %7 = arith.addf %3, %6 : vector<2x1x128xf32>
    %c0_9 = arith.constant 0 : index
    %c0_10 = arith.constant 0 : index
    %c0_11 = arith.constant 0 : index
    %8 = vector.load %arg7[%c0_9, %c0_10, %c0_11] : memref<2x1x128xf32, #tpu.memory_space<vmem>>, vector<2x1x128xf32>
    tpu.vector_store %arg7[%c0_9, %c0_10, %c0_11], %7 {strides = array<i32>} : memref<2x1x128xf32, #tpu.memory_space<vmem>>, vector<2x1x128xf32>,
    %c1_i32 = arith.constant 1 : i32
    %9 = arith.cmpi eq, %arg2, %c1_i32 : i32
    %10 = arith.extui %9 : i1 to i32
    %c0_i32_12 = arith.constant 0 : i32
    %11 = arith.cmpi ne, %10, %c0_i32_12 : i32
    scf.if %11 {
      %c0_13 = arith.constant 0 : index
      %c0_14 = arith.constant 0 : index
      %c0_15 = arith.constant 0 : index
      %12 = vector.load %arg5[%c0_13, %c0_14, %c0_15] : memref<2x1x1xf32, #tpu.memory_space<vmem>>, vector<2x1x1xf32>
      %cst_16 = arith.constant 9.99999971E-10 : f32
      %13 = vector.broadcast %cst_16 : f32 to vector<2x1x1xf32>
      %14 = arith.maximumf %12, %13 : vector<2x1x1xf32>
      %c0_17 = arith.constant 0 : index
      %c0_18 = arith.constant 0 : index
      %c0_19 = arith.constant 0 : index
      %15 = vector.load %arg7[%c0_17, %c0_18, %c0_19] : memref<2x1x128xf32, #tpu.memory_space<vmem>>, vector<2x1x128xf32>
      %16 = vector.broadcast %14 : vector<2x1x1xf32> to vector<2x1x128xf32>
      %17 = arith.divf %15, %16 : vector<2x1x128xf32>
      %c0_20 = arith.constant 0 : index
      %c0_21 = arith.constant 0 : index
      %c0_22 = arith.constant 0 : index
      %18 = vector.load %arg6[%c0_20, %c0_21, %c0_22] : memref<2x1x128xf32, #tpu.memory_space<vmem>>, vector<2x1x128xf32>
      tpu.vector_store %arg6[%c0_20, %c0_21, %c0_22], %17 {strides = array<i32>} : memref<2x1x128xf32, #tpu.memory_space<vmem>>, vector<2x1x128xf32>,
    } else {
    }
    return
  }
  func.func @transform_0(%arg0: i32, %arg1: i32, %arg2: i32) -> (i32, i32, i32) {
    %c0_i32 = arith.constant 0 : i32
    return %arg0, %arg2, %arg1 : i32, i32, i32
  }
  func.func @transform_1(%arg0: i32, %arg1: i32, %arg2: i32) -> (i32, i32, i32) {
    %c0_i32 = arith.constant 0 : i32
    %c0_i32_0 = arith.constant 0 : i32
    return %arg0, %c0_i32, %arg2 : i32, i32, i32
  }
  func.func @transform_2(%arg0: i32, %arg1: i32, %arg2: i32) -> (i32, i32, i32) {
    %c0_i32 = arith.constant 0 : i32
    %c0_i32_0 = arith.constant 0 : i32
    %c0_i32_1 = arith.constant 0 : i32
    return %arg0, %c0_i32, %c0_i32_0 : i32, i32, i32
  }
  func.func @transform_3(%arg0: i32, %arg1: i32, %arg2: i32) -> (i32, i32, i32) {
    %c0_i32 = arith.constant 0 : i32
    %c0_i32_0 = arith.constant 0 : i32
    return %arg0, %c0_i32, %arg1 : i32, i32, i32
  }
}

</mosaic_0001>

<llo_original>
// kernel: tpu_custom_call.1
$region0: #{tpu_custom_call.1}
  #allocation0 [shape = 'u32[]', space=smem, size = 0x4, offset = 0x4, fixed_abs, tag = 'smem constant byte address 0x4 - core index']
  #allocation1 [shape = 'u32[144,128]{1,0:T(1,128)}', space=vmem, size = 0x12000, scoped, tag = 'internal scratch']
  #allocation2 [shape = 'f32[2,1,128]{2,1,0:T(1,128)}', space=vmem, size = 0x400, scoped, tag = 'scratch operand']
  #allocation8 [shape = 's32[]', space=sflag, size = 0x4, offset = 0, fixed_abs, tag = 'sflag constant byte address 0x0 - dummy sync flag']
  %s0 = inlined_call_operand.hbm [shape: f32[2,256,128], index: 0, kind: input, shape index: {}]
  %s1 = inlined_call_operand.vmem [shape: f32[2,1,256], index: 1, kind: input, shape index: {}]
  %s2 = inlined_call_operand.vmem [shape: f32[2,1,1], index: 2, kind: input, shape index: {}]
  %s3 = inlined_call_operand.hbm [shape: f32[2,1,128], index: 3, kind: output, shape index: {}]
  %s4 = sld [smem:[#allocation0]]
  $region91: #{tpu_custom_call.1} parent=0
    _
  %s6 = ssub.s32 1, %s4
  %s7 = scalar_select 0, %s6, %s4
  $region1: #{tpu_custom_call.1} parent=0
    #allocation3 [shape = 'u8[262144]{0}', space=vmem, size = 0x40000, scoped, tag = 'input window, operand 0']
    #allocation4 [shape = 's32[2]{0}', space=sflag, size = 0x8, scoped, tag = 'scoped memory for tpu_custom_call.1']
    #allocation5 [shape = 's32[2]{0}', space=sflag, size = 0x8, scoped, tag = 'scoped memory for tpu_custom_call.1']
    #allocation6 [shape = 'u8[2048]{0}', space=vmem, size = 0x800, scoped, tag = 'input window, operand 1']
    #allocation7 [shape = 'u8[1024]{0}', space=vmem, size = 0x400, scoped, tag = 'output window, operand 0, single buffered']
    %8 = vsyncpa [#allocation4], 0
    %s9 = scalar_lea.sflag [#allocation4], 1
    %10 = vsyncpa %s9, 0
    %11 = vsyncpa [#allocation5], 0
    loop: start=0, step=1, limit=4
    $region2: #{tpu_custom_call.1} parent=1 // loop_pre_header
      _
    $region3: #{tpu_custom_call.1} parent=1 // loop_header
      %s13 = sphi 0, %s17
      %p14 = scmp.ge.s32.totalorder %s13, 4
      %s20 = sphi 0, %s39
      %s21 = sphi 0, %s35
      %s22 = sphi 0, %s31
      %s23 = sphi 0, %s20
      %s24 = sphi 0, %s21
      %s25 = sphi 0, %s22
      %s26 = sphi 0, %s23
      %s27 = sphi 0, %s24
      %s28 = sphi 0, %s25
      %s46 = sphi 0, %s48
      %s49 = sphi 0, %s46
      %s50 = sphi 0, %s49
      %s66 = sphi 0, %s50
      %s74 = sphi 0, %s76
      %s77 = sphi 0, %s74
      %s78 = sphi 0, %s77
      %s94 = sphi 0, %s78
      %s100 = sphi 0, %s102
      %s103 = sphi 0, %s100
      %s104 = sphi 0, %s103
      %s120 = sphi 0, %s104
      %s128 = sphi 0, %s130
      %s131 = sphi 0, %s128
      %s132 = sphi 0, %s131
      %s148 = sphi 0, %s132
    $region4: #{tpu_custom_call.1} parent=1 // loop_header_branch
      %16 = sbr.rel (%p14) target = $region8
    $region5: #{tpu_custom_call.1} parent=1 // loop_body
      %s18 = ssub.s32 %s13, 1
      %s19 = ssub.s32 %s13, 2
      %s29 = sadd.s32 1, %s22
      %p30 = scmp.ge.s32.totalorder %s29, 2
      %s31 = scalar_select %p30, 0, %s29
      %s32 = sadd.s32 1, %s21
      %s33 = scalar_select %p30, %s32, %s21
      %p34 = scmp.ge.s32.totalorder %s33, 1
      %s35 = scalar_select %p34, 0, %s33
      %s36 = sadd.s32 1, %s20
      %s37 = scalar_select %p34, %s36, %s20
      %p38 = scmp.ge.s32.totalorder %s37, 1
      %s39 = scalar_select %p38, 0, %s37
      %s40 = ssub.s32 %s20, %s39
      %s41 = ssub.s32 %s22, %s31
      %s42 = sor.u32 %s40, %s41
      %s43 = ssub.s32 %s21, %s35
      %s44 = sor.u32 %s42, %s43
      %p45 = scmp.eq.s32.totalorder %s44, 0
      %s47 = sadd.s32 %s46, 1
      %s48 = scalar_select %p45, %s46, %s47
      %p51 = pneg %p45
      %p52 = scmp.eq.s32.totalorder %s13, 1
      %p53 = por %p51, %p52
      %p54 = scmp.ne.s32.totalorder %s46, %s49
      %p55 = scmp.eq.s32.totalorder %s13, 0
      %p56 = por %p54, %p55
      %p57 = scmp.ne.s32.totalorder %s46, %s49
      %p58 = scmp.eq.s32.totalorder %s18, 1
      %p59 = por %p57, %p58
      %p60 = scmp.ne.s32.totalorder %s49, %s50
      %p61 = scmp.eq.s32.totalorder %s18, 0
      %p62 = por %p60, %p61
      %p63 = scmp.ne.s32.totalorder %s49, %s50
      %p64 = scmp.eq.s32.totalorder %s19, 1
      %p65 = por %p63, %p64
      %p67 = scmp.ne.s32.totalorder %s50, %s66
      %p68 = scmp.eq.s32.totalorder %s19, 0
      %p69 = por %p67, %p68
      %s70 = ssub.s32 %s20, %s39
      %s71 = ssub.s32 %s22, %s31
      %s72 = sor.u32 %s70, %s71
      %p73 = scmp.eq.s32.totalorder %s72, 0
      %s75 = sadd.s32 %s74, 1
      %s76 = scalar_select %p73, %s74, %s75
      %p79 = pneg %p73
      %p80 = scmp.eq.s32.totalorder %s13, 1
      %p81 = por %p79, %p80
      %p82 = scmp.ne.s32.totalorder %s74, %s77
      %p83 = scmp.eq.s32.totalorder %s13, 0
      %p84 = por %p82, %p83
      %p85 = scmp.ne.s32.totalorder %s74, %s77
      %p86 = scmp.eq.s32.totalorder %s18, 1
      %p87 = por %p85, %p86
      %p88 = scmp.ne.s32.totalorder %s77, %s78
      %p89 = scmp.eq.s32.totalorder %s18, 0
      %p90 = por %p88, %p89
      %p91 = scmp.ne.s32.totalorder %s77, %s78
      %p92 = scmp.eq.s32.totalorder %s19, 1
      %p93 = por %p91, %p92
      %p95 = scmp.ne.s32.totalorder %s78, %s94
      %p96 = scmp.eq.s32.totalorder %s19, 0
      %p97 = por %p95, %p96
      %s98 = ssub.s32 %s20, %s39
      %p99 = scmp.eq.s32.totalorder %s98, 0
      %s101 = sadd.s32 %s100, 1
      %s102 = scalar_select %p99, %s100, %s101
      %p105 = pneg %p99
      %p106 = scmp.eq.s32.totalorder %s13, 1
      %p107 = por %p105, %p106
      %p108 = scmp.ne.s32.totalorder %s100, %s103
      %p109 = scmp.eq.s32.totalorder %s13, 0
      %p110 = por %p108, %p109
      %p111 = scmp.ne.s32.totalorder %s100, %s103
      %p112 = scmp.eq.s32.totalorder %s18, 1
      %p113 = por %p111, %p112
      %p114 = scmp.ne.s32.totalorder %s103, %s104
      %p115 = scmp.eq.s32.totalorder %s18, 0
      %p116 = por %p114, %p115
      %p117 = scmp.ne.s32.totalorder %s103, %s104
      %p118 = scmp.eq.s32.totalorder %s19, 1
      %p119 = por %p117, %p118
      %p121 = scmp.ne.s32.totalorder %s104, %s120
      %p122 = scmp.eq.s32.totalorder %s19, 0
      %p123 = por %p121, %p122
      %s124 = ssub.s32 %s20, %s39
      %s125 = ssub.s32 %s21, %s35
      %s126 = sor.u32 %s124, %s125
      %p127 = scmp.eq.s32.totalorder %s126, 0
      %s129 = sadd.s32 %s128, 1
      %s130 = scalar_select %p127, %s128, %s129
      %p133 = pneg %p127
      %p134 = scmp.eq.s32.totalorder %s13, 1
      %p135 = por %p133, %p134
      %p136 = scmp.ne.s32.totalorder %s128, %s131
      %p137 = scmp.eq.s32.totalorder %s13, 0
      %p138 = por %p136, %p137
      %p139 = scmp.ne.s32.totalorder %s128, %s131
      %p140 = scmp.eq.s32.totalorder %s18, 1
      %p141 = por %p139, %p140
      %p142 = scmp.ne.s32.totalorder %s131, %s132
      %p143 = scmp.eq.s32.totalorder %s18, 0
      %p144 = por %p142, %p143
      %p145 = scmp.ne.s32.totalorder %s131, %s132
      %p146 = scmp.eq.s32.totalorder %s19, 1
      %p147 = por %p145, %p146
      %p149 = scmp.ne.s32.totalorder %s132, %s148
      %p150 = scmp.eq.s32.totalorder %s19, 0
      %p151 = por %p149, %p150
      %p152 = scmp.le.s32.totalorder 1, %s13
      %p153 = scmp.lt.s32.totalorder %s13, 3
      %p154 = pnand %p152, %p153
      %p155 = pneg %p154
      // Predicated region
      $region9: #{tpu_custom_call.1} parent=5 // pred_check
        _
      $region10: #{tpu_custom_call.1} parent=5 // pred_check_branch
        %157 = sbr.rel (%p154) target = $region12
      $region11: #{tpu_custom_call.1} parent=5 // pred_region
        %s158 = ssub.s32 %s13, 1
        // Predicated region
        $region13: #{tpu_custom_call.1} parent=11 // pred_check
          %p159 = pneg %p116
        $region14: #{tpu_custom_call.1} parent=11 // pred_check_branch
          %161 = sbr.rel (%p159) target = $region16
        $region15: #{tpu_custom_call.1} parent=11 // pred_region
          %s162 = smul.u32 2, %s23
          %p163 = scmp.lt.s32.totalorder %s162, 1
          %s164 = scalar_select %p163, %s162, 1
          %s165 = scalar_lea.vmem %s2, %s164
          %s166 = smul.u32 2, %s23
        $region16: #{tpu_custom_call.1} parent=11 // pred_fallthru
          _
      $region12: #{tpu_custom_call.1} parent=5 // pred_fallthru
        _
      %p167 = scmp.lt.s32.totalorder %s13, 2
      // Predicated region
      $region17: #{tpu_custom_call.1} parent=5 // pred_check
        %p168 = pneg %p167
      $region18: #{tpu_custom_call.1} parent=5 // pred_check_branch
        %170 = sbr.rel (%p168) target = $region20
      $region19: #{tpu_custom_call.1} parent=5 // pred_region
        // Predicated region
        $region21: #{tpu_custom_call.1} parent=19 // pred_check
          %p171 = pneg %p56
        $region22: #{tpu_custom_call.1} parent=19 // pred_check_branch
          %173 = sbr.rel (%p171) target = $region24
        $region23: #{tpu_custom_call.1} parent=19 // pred_region
          #allocation9 [shape = 'u32[6]{0}', space=smem, size = 0x18, scoped, tag = 'DMA stride descriptor']
          %s174 = sand.u32 %s46, 1
          %s175 = scalar_lea.sflag [#allocation4], %s174
          %s176 = sand.u32 %s46, 1
          %s177 = smul.addr %s176, 256
          %s178 = scalar_lea.vmem [#allocation3], %s177
          %s179 = smul.u32 2, %s20
          %s180 = smul.u32 16, %s22
          %s182 = ssub.s32 4096, 4096
          %183 = vsyncadd %s175, %s182
          %s184 = sadd.s32 %s21, %s180
          %s185 = smul.addr %s179, 32
          %s186 = sadd.s32 %s184, %s185
          %s187 = smul.addr %s186, 128
          %s188 = scalar_lea.hbm %s0, %s187
          %s190 = sshll.u32 1, 14
          %s191 = sxor.u32 4294967295, %s190
          %s193 = sld [smem:[#allocation0]]
          %s194 = sadd.s32 2, %s193
          %s196 = sshll.u32 7, 26
          %s197 = sxor.u32 4294967295, %s196
          %s198 = sand.u32 0, %s197
          %s199 = sshll.u32 %s194, 26
          %s200 = sor.u32 %s198, %s199
          %s201 = sshll.u32 %s178, 4
          %s202 = int_to_ptr.vmem [resolvable:$true] %s201
          %208 = sst [smem:[#allocation9]] 4096
          %s209 = scalar_lea.smem [#allocation9], 1
          %210 = sst [smem:[%s209]] 2048
          %s211 = scalar_lea.smem [#allocation9], 2
          %212 = sst [smem:[%s211]] 16
          %s213 = scalar_lea.smem [#allocation9], 3
          %214 = sst [smem:[%s213]] 128
          %s215 = scalar_lea.smem [#allocation9], 4
          %216 = sst [smem:[%s215]] 128
          %s217 = scalar_lea.smem [#allocation9], 5
          %218 = sst [smem:[%s217]] 8
          %220 = dma.general %s188, 4096, %s202, %s175, 131072, [#allocation9], %s200, 0
        $region24: #{tpu_custom_call.1} parent=19 // pred_fallthru
          _
        // Predicated region
        $region25: #{tpu_custom_call.1} parent=19 // pred_check
          %p221 = pneg %p84
        $region26: #{tpu_custom_call.1} parent=19 // pred_check_branch
          %223 = sbr.rel (%p221) target = $region28
        $region27: #{tpu_custom_call.1} parent=19 // pred_region
          %s224 = sand.u32 %s74, 1
          %s225 = sand.u32 %s74, 1
          %s226 = smul.addr %s225, 2
          %s227 = scalar_lea.vmem [#allocation6], %s226
          %s228 = smul.u32 2, %s20
          %s229 = smul.addr %s228, 2
          %s230 = sadd.s32 %s22, %s229
          %s231 = scalar_lea.vmem %s1, %s230
          // Predicated region
          $region29: #{tpu_custom_call.1} parent=27 // pred_check
            _
          $region30: #{tpu_custom_call.1} parent=27 // pred_check_branch
            %233 = sbr.rel (0) target = $region32
          $region31: #{tpu_custom_call.1} parent=27 // pred_region
            // Predicated region
            $region33: #{tpu_custom_call.1} parent=31 // pred_check
              _
            $region34: #{tpu_custom_call.1} parent=31 // pred_check_branch
              %235 = sbr.rel target = $region36
            $region35: #{tpu_custom_call.1} parent=31 // pred_region
              // Predicated region
              $region48: #{tpu_custom_call.1} parent=35 // pred_check
                _
              $region49: #{tpu_custom_call.1} parent=35 // pred_check_branch
                %253 = sbr.rel (0) target = $region51
              $region50: #{tpu_custom_call.1} parent=35 // pred_region
                %s255 = ssub.s32 2, 1
                loop: start=0, step=1, limit=1
                $region52: #{tpu_custom_call.1} parent=50 // loop_pre_header
                  _
                $region53: #{tpu_custom_call.1} parent=50 // loop_header
                  %s257 = sphi 0, %s261
                  %p258 = scmp.ge.s32.totalorder %s257, 1
                  %s262 = sphi %s231, %s231
                  %s263 = sphi %s227, %s227
                $region54: #{tpu_custom_call.1} parent=50 // loop_header_branch
                  %260 = sbr.rel (%p258) target = $region58
                $region55: #{tpu_custom_call.1} parent=50 // loop_body
                  %v264 = vld [vmem:[%s262] sm:%s255]
                  %265 = vst [vmem:[%s263] sm:%s255] %v264
                  %v266 = vld [vmem:[%s262 + $0x2] sm:%s255]
                  %267 = vst [vmem:[%s263 + $0x1] sm:%s255] %v266
                $region56: #{tpu_custom_call.1} parent=50 // loop_footer
                  %s261 = sadd.s32 1, %s257
                $region57: #{tpu_custom_call.1} parent=50 // loop_footer_branch
                  %256 = sbr.rel target = $region53
                $region58: #{tpu_custom_call.1} parent=50 // loop_exit
                  _
              $region51: #{tpu_custom_call.1} parent=35 // pred_fallthru
                _
            $region36: #{tpu_custom_call.1} parent=31 // pred_fallthru
              _
            // Predicated region
            $region37: #{tpu_custom_call.1} parent=31 // pred_check
              _
            $region38: #{tpu_custom_call.1} parent=31 // pred_check_branch
              %237 = sbr.rel (0) target = $region40
            $region39: #{tpu_custom_call.1} parent=31 // pred_region
              %s239 = ssub.s32 2, 1
              loop: start=0, step=1, limit=1
              $region41: #{tpu_custom_call.1} parent=39 // loop_pre_header
                _
              $region42: #{tpu_custom_call.1} parent=39 // loop_header
                %s241 = sphi 0, %s245
                %p242 = scmp.ge.s32.totalorder %s241, 1
                %s246 = sphi %s231, %s231
                %s247 = sphi %s227, %s227
              $region43: #{tpu_custom_call.1} parent=39 // loop_header_branch
                %244 = sbr.rel (%p242) target = $region47
              $region44: #{tpu_custom_call.1} parent=39 // loop_body
                %v248 = vld [vmem:[%s246] sm:%s239]
                %249 = vst [vmem:[%s247] sm:%s239] %v248
                %v250 = vld [vmem:[%s246 + $0x2] sm:%s239]
                %251 = vst [vmem:[%s247 + $0x1] sm:%s239] %v250
              $region45: #{tpu_custom_call.1} parent=39 // loop_footer
                %s245 = sadd.s32 1, %s241
              $region46: #{tpu_custom_call.1} parent=39 // loop_footer_branch
                %240 = sbr.rel target = $region42
              $region47: #{tpu_custom_call.1} parent=39 // loop_exit
                _
            $region40: #{tpu_custom_call.1} parent=31 // pred_fallthru
              _
          $region32: #{tpu_custom_call.1} parent=27 // pred_fallthru
            _
          %268 = vnop
        $region28: #{tpu_custom_call.1} parent=19 // pred_fallthru
          _
      $region20: #{tpu_custom_call.1} parent=5 // pred_fallthru
        _
      %p269 = scmp.le.s32.totalorder 1, %s13
      %p270 = scmp.lt.s32.totalorder %s13, 3
      %p271 = pnand %p269, %p270
      %p272 = pneg %p271
      // Predicated region
      $region59: #{tpu_custom_call.1} parent=5 // pred_check
        _
      $region60: #{tpu_custom_call.1} parent=5 // pred_check_branch
        %274 = sbr.rel (%p271) target = $region62
      $region61: #{tpu_custom_call.1} parent=5 // pred_region
        %s275 = ssub.s32 %s13, 1
        %s276 = sand.u32 %s49, 1
        %s277 = scalar_lea.sflag [#allocation4], %s276
        %s278 = sand.u32 %s49, 1
        %s279 = smul.addr %s278, 256
        %s280 = scalar_lea.vmem [#allocation3], %s279
        // Predicated region
        $region63: #{tpu_custom_call.1} parent=61 // pred_check
          %p281 = pneg %p62
        $region64: #{tpu_custom_call.1} parent=61 // pred_check_branch
          %283 = sbr.rel (%p281) target = $region66
        $region65: #{tpu_custom_call.1} parent=61 // pred_region
          %284 = dma.done %s277, 4096
        $region66: #{tpu_custom_call.1} parent=61 // pred_fallthru
          _
        %s285 = sand.u32 %s77, 1
        %s286 = sand.u32 %s77, 1
        %s287 = smul.addr %s286, 2
        %s288 = scalar_lea.vmem [#allocation6], %s287
        // Predicated region
        $region67: #{tpu_custom_call.1} parent=61 // pred_check
          %p289 = pneg %p90
        $region68: #{tpu_custom_call.1} parent=61 // pred_check_branch
          %291 = sbr.rel (%p289) target = $region70
        $region69: #{tpu_custom_call.1} parent=61 // pred_region
          _
        $region70: #{tpu_custom_call.1} parent=61 // pred_fallthru
          _
        %s292 = sand.u32 %s49, 1
        %s293 = scalar_lea.sflag [#allocation4], %s292
        %s294 = sand.u32 %s49, 1
        %s295 = smul.addr %s294, 256
        %s296 = scalar_lea.vmem [#allocation3], %s295
        %p297 = pneg %p62
        %p298 = pneg %p59
        %s299 = sand.u32 %s77, 1
        %s300 = sand.u32 %s77, 1
        %s301 = smul.addr %s300, 2
        %s302 = scalar_lea.vmem [#allocation6], %s301
        %p303 = pneg %p90
        %p304 = pneg %p87
        %s305 = smul.u32 2, %s23
        %p306 = scmp.lt.s32.totalorder %s305, 1
        %s307 = scalar_select %p306, %s305, 1
        %s308 = scalar_lea.vmem %s2, %s307
        %p309 = pneg %p116
        %p310 = pneg %p113
        %p311 = pneg %p144
        %p312 = pneg %p141
        %s313 = smul.u32 2, %s23
        %s314 = smul.u32 16, %s25
        %s315 = smul.u32 2, %s23
        %s316 = smul.u32 2, %s23
        %p317 = scmp.lt.s32.totalorder %s316, 1
        %s318 = scalar_select %p317, %s316, 1
        %s319 = scalar_lea.vmem %s2, %s318
        %s320 = smul.u32 2, %s23
        %s321 = smul.u32 2, %s23
        %p322 = scmp.eq.s32.totalorder %s25, 0
        // Predicated region
        $region71: #{tpu_custom_call.1} parent=61 // pred_check
          %p323 = pneg %p322
        $region72: #{tpu_custom_call.1} parent=61 // pred_check_branch
          %325 = sbr.rel (%p323) target = $region74
        $region73: #{tpu_custom_call.1} parent=61 // pred_region
          %326 = vst [vmem:[#allocation2] sm:$0x1] 0.0
          %327 = vst [vmem:[#allocation2 + $0x1] sm:$0x1] 0.0
        $region74: #{tpu_custom_call.1} parent=61 // pred_fallthru
          _
        %v328 = vld [vmem:[#allocation2] sm:$0x1]
        %v329 = vld [vmem:[#allocation2 + $0x1] sm:$0x1]
        %v330 = vld [vmem:[%s288] sm:$0x1]
        %v331 = vld [vmem:[%s288 + $0x1] sm:$0x1]
        %v332 = vld [vmem:[%s280] sm:$0xff]
        %v333 = vld [vmem:[%s280 + $0x8] sm:$0xff]
        %v334 = vld [vmem:[%s280 + $0x10] sm:$0xff]
        %v335 = vld [vmem:[%s280 + $0x18] sm:$0xff]
        %v336 = vld [vmem:[%s280 + $0x20] sm:$0xff]
        %v337 = vld [vmem:[%s280 + $0x28] sm:$0xff]
        %v338 = vld [vmem:[%s280 + $0x30] sm:$0xff]
        %v339 = vld [vmem:[%s280 + $0x38] sm:$0xff]
        %v340 = vld [vmem:[%s280 + $0x40] sm:$0xff]
        %v341 = vld [vmem:[%s280 + $0x48] sm:$0xff]
        %v342 = vld [vmem:[%s280 + $0x50] sm:$0xff]
        %v343 = vld [vmem:[%s280 + $0x58] sm:$0xff]
        %v344 = vld [vmem:[%s280 + $0x60] sm:$0xff]
        %v345 = vld [vmem:[%s280 + $0x68] sm:$0xff]
        %v346 = vld [vmem:[%s280 + $0x70] sm:$0xff]
        %v347 = vld [vmem:[%s280 + $0x78] sm:$0xff]
        %v348 = vld [vmem:[%s280 + $0x80] sm:$0xff]
        %v349 = vld [vmem:[%s280 + $0x88] sm:$0xff]
        %v350 = vld [vmem:[%s280 + $0x90] sm:$0xff]
        %v351 = vld [vmem:[%s280 + $0x98] sm:$0xff]
        %v352 = vld [vmem:[%s280 + $0xa0] sm:$0xff]
        %v353 = vld [vmem:[%s280 + $0xa8] sm:$0xff]
        %v354 = vld [vmem:[%s280 + $0xb0] sm:$0xff]
        %v355 = vld [vmem:[%s280 + $0xb8] sm:$0xff]
        %v356 = vld [vmem:[%s280 + $0xc0] sm:$0xff]
        %v357 = vld [vmem:[%s280 + $0xc8] sm:$0xff]
        %v358 = vld [vmem:[%s280 + $0xd0] sm:$0xff]
        %v359 = vld [vmem:[%s280 + $0xd8] sm:$0xff]
        %v360 = vld [vmem:[%s280 + $0xe0] sm:$0xff]
        %v361 = vld [vmem:[%s280 + $0xe8] sm:$0xff]
        %v362 = vld [vmem:[%s280 + $0xf0] sm:$0xff]
        %v363 = vld [vmem:[%s280 + $0xf8] sm:$0xff]
        %364 = vmatprep.subr.mxu0 0.0
        %365 = vmatpush1.msra.mxu0 %v347
        %366 = vmatprep.subr.mxu0 0.0
        %367 = vmatpush1.msra.mxu0 %v346
        %368 = vmatprep.subr.mxu0 0.0
        %369 = vmatpush1.msra.mxu0 %v345
        %370 = vmatprep.subr.mxu0 0.0
        %371 = vmatpush1.msra.mxu0 %v344
        %372 = vmatprep.subr.mxu0 0.0
        %373 = vmatpush1.msra.mxu0 %v343
        %374 = vmatprep.subr.mxu0 0.0
        %375 = vmatpush1.msra.mxu0 %v342
        %376 = vmatprep.subr.mxu0 0.0
        %377 = vmatpush1.msra.mxu0 %v341
        %378 = vmatprep.subr.mxu0 0.0
        %379 = vmatpush1.msra.mxu0 %v340
        %380 = vmatprep.subr.mxu0 0.0
        %381 = vmatpush1.msra.mxu0 %v339
        %382 = vmatprep.subr.mxu0 0.0
        %383 = vmatpush1.msra.mxu0 %v338
        %384 = vmatprep.subr.mxu0 0.0
        %385 = vmatpush1.msra.mxu0 %v337
        %386 = vmatprep.subr.mxu0 0.0
        %387 = vmatpush1.msra.mxu0 %v336
        %388 = vmatprep.subr.mxu0 0.0
        %389 = vmatpush1.msra.mxu0 %v335
        %390 = vmatprep.subr.mxu0 0.0
        %391 = vmatpush1.msra.mxu0 %v334
        %392 = vmatprep.subr.mxu0 0.0
        %393 = vmatpush1.msra.mxu0 %v333
        %394 = vmatprep.subr.mxu0 0.0
        %395 = vmatpush1.msra.mxu0 %v332
        %396 = vmatprep.subr.mxu0 0.0
        %397 = vmatpush2.msra.mxu0 0.0
        %398 = vmatprep.subr.mxu0 0.0
        %399 = vmatpush2.msra.mxu0 0.0
        %400 = vmatprep.subr.mxu0 0.0
        %401 = vmatpush2.msra.mxu0 0.0
        %402 = vmatprep.subr.mxu0 0.0
        %403 = vmatpush2.msra.mxu0 0.0
        %404 = vmatprep.subr.mxu0 0.0
        %405 = vmatpush2.msra.mxu0 0.0
        %406 = vmatprep.subr.mxu0 0.0
        %407 = vmatpush2.msra.mxu0 0.0
        %408 = vmatprep.subr.mxu0 0.0
        %409 = vmatpush2.msra.mxu0 0.0
        %410 = vmatprep.subr.mxu0 0.0
        %411 = vmatpush2.msra.mxu0 0.0
        %412 = vmatprep.subr.mxu0 0.0
        %413 = vmatpush2.msra.mxu0 0.0
        %414 = vmatprep.subr.mxu0 0.0
        %415 = vmatpush2.msra.mxu0 0.0
        %416 = vmatprep.subr.mxu0 0.0
        %417 = vmatpush2.msra.mxu0 0.0
        %418 = vmatprep.subr.mxu0 0.0
        %419 = vmatpush2.msra.mxu0 0.0
        %420 = vmatprep.subr.mxu0 0.0
        %421 = vmatpush2.msra.mxu0 0.0
        %422 = vmatprep.subr.mxu0 0.0
        %423 = vmatpush2.msra.mxu0 0.0
        %424 = vmatprep.subr.mxu0 0.0
        %425 = vmatpush2.msra.mxu0 0.0
        %426 = vmatprep.subr.mxu0 0.0
        %427 = vmatpush2.msra.mxu0 0.0
        %428 = vmatprep.mubr.f32.mxu0 0.0
        %429 = vmatmul.mubr.f32.gmra.mxu0 %v330
        %v430 = vpop.f32.mrf.mxu0
        %v431 = vadd.f32 0.0, %v430
        %v432 = vpop.f32.mrf.mxu0
        %433 = vdwg.mxu0
        %434 = vmatprep.subr.mxu0 0.0
        %435 = vmatpush1.msra.mxu0 %v363
        %436 = vmatprep.subr.mxu0 0.0
        %437 = vmatpush1.msra.mxu0 %v362
        %438 = vmatprep.subr.mxu0 0.0
        %439 = vmatpush1.msra.mxu0 %v361
        %440 = vmatprep.subr.mxu0 0.0
        %441 = vmatpush1.msra.mxu0 %v360
        %442 = vmatprep.subr.mxu0 0.0
        %443 = vmatpush1.msra.mxu0 %v359
        %444 = vmatprep.subr.mxu0 0.0
        %445 = vmatpush1.msra.mxu0 %v358
        %446 = vmatprep.subr.mxu0 0.0
        %447 = vmatpush1.msra.mxu0 %v357
        %448 = vmatprep.subr.mxu0 0.0
        %449 = vmatpush1.msra.mxu0 %v356
        %450 = vmatprep.subr.mxu0 0.0
        %451 = vmatpush1.msra.mxu0 %v355
        %452 = vmatprep.subr.mxu0 0.0
        %453 = vmatpush1.msra.mxu0 %v354
        %454 = vmatprep.subr.mxu0 0.0
        %455 = vmatpush1.msra.mxu0 %v353
        %456 = vmatprep.subr.mxu0 0.0
        %457 = vmatpush1.msra.mxu0 %v352
        %458 = vmatprep.subr.mxu0 0.0
        %459 = vmatpush1.msra.mxu0 %v351
        %460 = vmatprep.subr.mxu0 0.0
        %461 = vmatpush1.msra.mxu0 %v350
        %462 = vmatprep.subr.mxu0 0.0
        %463 = vmatpush1.msra.mxu0 %v349
        %464 = vmatprep.subr.mxu0 0.0
        %465 = vmatpush1.msra.mxu0 %v348
        %466 = vmatprep.subr.mxu0 0.0
        %467 = vmatpush2.msra.mxu0 0.0
        %468 = vmatprep.subr.mxu0 0.0
        %469 = vmatpush2.msra.mxu0 0.0
        %470 = vmatprep.subr.mxu0 0.0
        %471 = vmatpush2.msra.mxu0 0.0
        %472 = vmatprep.subr.mxu0 0.0
        %473 = vmatpush2.msra.mxu0 0.0
        %474 = vmatprep.subr.mxu0 0.0
        %475 = vmatpush2.msra.mxu0 0.0
        %476 = vmatprep.subr.mxu0 0.0
        %477 = vmatpush2.msra.mxu0 0.0
        %478 = vmatprep.subr.mxu0 0.0
        %479 = vmatpush2.msra.mxu0 0.0
        %480 = vmatprep.subr.mxu0 0.0
        %481 = vmatpush2.msra.mxu0 0.0
        %482 = vmatprep.subr.mxu0 0.0
        %483 = vmatpush2.msra.mxu0 0.0
        %484 = vmatprep.subr.mxu0 0.0
        %485 = vmatpush2.msra.mxu0 0.0
        %486 = vmatprep.subr.mxu0 0.0
        %487 = vmatpush2.msra.mxu0 0.0
        %488 = vmatprep.subr.mxu0 0.0
        %489 = vmatpush2.msra.mxu0 0.0
        %490 = vmatprep.subr.mxu0 0.0
        %491 = vmatpush2.msra.mxu0 0.0
        %492 = vmatprep.subr.mxu0 0.0
        %493 = vmatpush2.msra.mxu0 0.0
        %494 = vmatprep.subr.mxu0 0.0
        %495 = vmatpush2.msra.mxu0 0.0
        %496 = vmatprep.subr.mxu0 0.0
        %497 = vmatpush2.msra.mxu0 0.0
        %498 = vmatprep.mubr.f32.mxu0 0.0
        %499 = vmatmul.mubr.f32.gmra.mxu0 %v331
        %v500 = vpop.f32.mrf.mxu0
        %v501 = vadd.f32 0.0, %v500
        %v502 = vpop.f32.mrf.mxu0
        %503 = vdwg.mxu0
        %v504 = vadd.f32 %v328, %v431
        %v505 = vadd.f32 %v329, %v501
        %506 = vst [vmem:[#allocation2] sm:$0x1] %v504
        %507 = vst [vmem:[#allocation2 + $0x1] sm:$0x1] %v505
        %p508 = scmp.eq.s32.totalorder %s25, 1
        // Predicated region
        $region75: #{tpu_custom_call.1} parent=61 // pred_check
          %p509 = pneg %p508
        $region76: #{tpu_custom_call.1} parent=61 // pred_check_branch
          %511 = sbr.rel (%p509) target = $region78
        $region77: #{tpu_custom_call.1} parent=61 // pred_region
          %v512 = vld [vmem:[%s319] sm:$0x1]
          %v513 = vld [vmem:[%s319 + $0x1] sm:$0x1]
          %v514 = vmax.f32 %v512, 1e-09
          %v515 = vmax.f32 %v513, 1e-09
          %v516 = vld [vmem:[#allocation2] sm:$0x1]
          %v517 = vld [vmem:[#allocation2 + $0x1] sm:$0x1]
          %519 = vset.pattern.permute.xlu0 0
          %520 = vperm.xlu0 %519, %v514
          %v521 = vpop.permute.xlu0 %520
          %v523 = vlaneseq
          %v524 = vshrl.u32 %v523, 7
          %v525 = vsub.s32 0, %v524
          %v526 = vrot.slane %v521, %v525
          %528 = vset.pattern.permute.xlu0 0
          %529 = vperm.xlu0 %528, %v515
          %v530 = vpop.permute.xlu0 %529
          %v532 = vlaneseq
          %v533 = vshrl.u32 %v532, 7
          %v534 = vsub.s32 0, %v533
          %v535 = vrot.slane %v530, %v534
          %v536 = vrcp.pop %v526
          %v537 = vmul.f32 %v516, %v536
          %v538 = vrcp.pop %v535
          %v539 = vmul.f32 %v517, %v538
          %540 = vst [vmem:[#allocation7] sm:$0x1] %v537
          %541 = vst [vmem:[#allocation7 + $0x1] sm:$0x1] %v539
        $region78: #{tpu_custom_call.1} parent=61 // pred_fallthru
          _
        // Predicated region
        $region79: #{tpu_custom_call.1} parent=61 // pred_check
          %p542 = pneg %p141
        $region80: #{tpu_custom_call.1} parent=61 // pred_check_branch
          %544 = sbr.rel (%p542) target = $region82
        $region81: #{tpu_custom_call.1} parent=61 // pred_region
          %s545 = smul.u32 2, %s23
          %s547 = ssub.s32 32, 32
          %548 = vsyncadd [#allocation5], %s547
          %s549 = sadd.s32 %s24, %s545
          %s550 = smul.addr %s549, 16
          %s551 = scalar_lea.hbm %s3, %s550
          %s552 = sshll.u32 [#allocation7], 4
          %s553 = int_to_ptr.vmem [resolvable:$true] %s552
          %558 = dma.vmem_to_hbm [thread:$0]  %s553, 32, %s551, [#allocation5], 16, 16, 1
        $region82: #{tpu_custom_call.1} parent=61 // pred_fallthru
          _
        // Predicated region
        $region83: #{tpu_custom_call.1} parent=61 // pred_check
          %p559 = pneg %p141
        $region84: #{tpu_custom_call.1} parent=61 // pred_check_branch
          %561 = sbr.rel (%p559) target = $region86
        $region85: #{tpu_custom_call.1} parent=61 // pred_region
          %562 = dma.done [#allocation5], 32
        $region86: #{tpu_custom_call.1} parent=61 // pred_fallthru
          _
      $region62: #{tpu_custom_call.1} parent=5 // pred_fallthru
        _
      %p563 = scmp.le.s32.totalorder 2, %s13
      // Predicated region
      $region87: #{tpu_custom_call.1} parent=5 // pred_check
        %p564 = pneg %p563
      $region88: #{tpu_custom_call.1} parent=5 // pred_check_branch
        %566 = sbr.rel (%p564) target = $region90
      $region89: #{tpu_custom_call.1} parent=5 // pred_region
        %s567 = ssub.s32 %s13, 2
      $region90: #{tpu_custom_call.1} parent=5 // pred_fallthru
        _
    $region6: #{tpu_custom_call.1} parent=1 // loop_footer
      %s17 = sadd.s32 1, %s13
    $region7: #{tpu_custom_call.1} parent=1 // loop_footer_branch
      %12 = sbr.rel target = $region3
    $region8: #{tpu_custom_call.1} parent=1 // loop_exit
      _
    %568 = vsyncpa [#allocation4], 1
    %s569 = scalar_lea.sflag [#allocation4], 1
    %570 = vsyncpa %s569, 1
    %571 = vsyncpa [#allocation5], 1
    %s572 = scalar_lea.sflag [#allocation5], 1
    %573 = vsyncpa %s572, 1

</llo_original>
